<compile_context>
chip_gen: v7x
topology: tpu7x:2x2x1
jax: 0.10.0
libtpu: 0.0.40
codegen_flags: <defaults>
</compile_context>

<pallas_src>
import functools

import jax
import jax.numpy as jnp
from jax.experimental import pallas as pl
from jax.experimental.pallas import tpu as pltpu

_EPSILON = 1e-5
_LANES = 128
_SUBLANES = 8
_SMALL_N = 32768   # below this, a fused XLA reduction beats kernel launch overhead


def _esr_kernel(o_ref, t_ref, acc_d_ref, acc_e_ref, *,
                rows, tile_rows, tiles_per_split, needs_mask):
    c = pl.program_id(0)   # row-range split (one per TensorCore on v7x, extent 1 elsewhere)
    j = pl.program_id(1)   # sequential tiles within this split

    @pl.when(j == 0)
    def _():
        acc_d_ref[...] = jnp.zeros((_SUBLANES, _LANES), jnp.float32)
        acc_e_ref[...] = jnp.zeros((_SUBLANES, _LANES), jnp.float32)

    t = t_ref[...].astype(jnp.float32)
    o = o_ref[...].astype(jnp.float32)

    def accumulate(tv, ov):
        d = tv - ov
        # Pure-VPU partial reduction: fold the tile into one (8,128) vreg per term.
        acc_d_ref[...] += jnp.sum(
            (d * d).reshape(tile_rows // _SUBLANES, _SUBLANES, _LANES), axis=0)
        acc_e_ref[...] += jnp.sum(
            (tv * tv).reshape(tile_rows // _SUBLANES, _SUBLANES, _LANES), axis=0)

    if needs_mask:
        # Only the partial tail tile (and any clamped duplicate block on the last
        # split) pays for the iota/compare/where; interior tiles stay unmasked.
        start = (c * tiles_per_split + j) * tile_rows
        valid = rows - start                     # may be <= 0 or >= tile_rows

        @pl.when(valid >= tile_rows)
        def _():
            accumulate(t, o)

        @pl.when(valid < tile_rows)
        def _():
            row_ids = jax.lax.broadcasted_iota(jnp.int32, (tile_rows, _LANES), 0)
            keep = row_ids < valid
            accumulate(jnp.where(keep, t, 0.0), jnp.where(keep, o, 0.0))
    else:
        accumulate(t, o)


def _tile_config(itemsize):
    """Pick (tile_rows_cap, num_splits) for the local TPU generation."""
    try:
        kind = jax.devices()[0].device_kind.lower()
    except Exception:
        kind = ""
    if "v7" in kind or "7x" in kind:
        # 3.2 TB/s HBM, 64 MiB VMEM, 2 TensorCores/chip: 4 MiB blocks, 2-way split.
        buf_bytes, num_splits = 4 << 20, 2
    elif "v5e" in kind or "v5 lite" in kind or "v5lite" in kind:
        # 16 MiB default scoped VMEM: 2 MiB blocks keep 2 inputs x 2 buffers at 8 MiB.
        buf_bytes, num_splits = 2 << 20, 1
    elif "v2" in kind or "v3" in kind or not kind:
        buf_bytes, num_splits = 1 << 20, 1     # conservative for old / unknown chips
    else:
        # v4 / v5p / v6e: single TC per jax device, plenty of VMEM.
        buf_bytes, num_splits = 4 << 20, 1
    tile_rows = max(_SUBLANES,
                    (buf_bytes // (_LANES * itemsize)) // _SUBLANES * _SUBLANES)
    return tile_rows, num_splits


def esr_loss(output, target, pooling=False, scale_factor=0.01):
    """ESR loss. Matches ESRLoss.forward with pooling=False."""
    if pooling:
        # TODO(synk): pooling=True branch (AdaptiveAvgPool1d + linear interpolate)
        # has no clean Pallas equivalent here; only pooling=False is implemented.
        raise NotImplementedError("pooling=True branch not implemented in Pallas")

    assert output.shape == target.shape
    n = int(output.size)
    if n == 0:
        return jnp.float32(0.0)

    if n < _SMALL_N:
        # Tiny inputs: kernel launch + pipeline warm-up dominates; use fused XLA.
        t = jnp.ravel(target).astype(jnp.float32)
        o = jnp.ravel(output).astype(jnp.float32)
        d = t - o
        loss = jnp.mean(d * d)
        energy = jnp.mean(t * t) + jnp.float32(_EPSILON)
        return loss / energy

    o_flat = jnp.ravel(output)
    t_flat = jnp.ravel(target)
    itemsize = max(o_flat.dtype.itemsize, t_flat.dtype.itemsize)

    rows = n // _LANES            # full lane-aligned rows streamed by the kernel
    n_main = rows * _LANES
    rem = n - n_main              # < 128 leftover elements, reduced in the wrapper

    tile_rows_cap, num_splits = _tile_config(itemsize)
    tile_rows = min(tile_rows_cap, (-(-rows // _SUBLANES)) * _SUBLANES)
    tiles_total = -(-rows // tile_rows)
    num_splits = min(num_splits, tiles_total)
    tiles_per_split = -(-tiles_total // num_splits)
    needs_mask = (rows % tile_rows != 0) or (tiles_total % num_splits != 0)

    # Lane-dense main slab. When n is already a multiple of 128 this is a free
    # bitcast reshape; otherwise only the aligned prefix is materialized (and the
    # <128-element remainder never touches the kernel).
    o2d = o_flat[:n_main].reshape(rows, _LANES)
    t2d = t_flat[:n_main].reshape(rows, _LANES)

    def in_idx(c, j):
        # Clamp so any "extra" block on the last split stays in bounds; its
        # contribution is masked to zero inside the kernel.
        return (jnp.minimum(c * tiles_per_split + j, tiles_total - 1), 0)

    kernel = functools.partial(
        _esr_kernel, rows=rows, tile_rows=tile_rows,
        tiles_per_split=tiles_per_split, needs_mask=needs_mask)

    out_bytes = 2 * num_splits * _SUBLANES * _LANES * 4
    cost = pl.CostEstimate(
        flops=5 * n_main,
        transcendentals=0,
        bytes_accessed=n_main * (o_flat.dtype.itemsize + t_flat.dtype.itemsize)
        + out_bytes)

    # 2 inputs x 2 pipeline buffers x tile, plus headroom for accumulators and
    # Mosaic internal scratch.
    vmem_limit = 4 * tile_rows * _LANES * itemsize + (8 << 20)

    part_d, part_e = pl.pallas_call(
        kernel,
        out_shape=(
            jax.ShapeDtypeStruct((num_splits * _SUBLANES, _LANES), jnp.float32),
            jax.ShapeDtypeStruct((num_splits * _SUBLANES, _LANES), jnp.float32),
        ),
        grid_spec=pltpu.PrefetchScalarGridSpec(
            num_scalar_prefetch=0,
            grid=(num_splits, tiles_per_split),
            in_specs=[
                pl.BlockSpec((tile_rows, _LANES), in_idx),
                pl.BlockSpec((tile_rows, _LANES), in_idx),
            ],
            out_specs=[
                pl.BlockSpec((_SUBLANES, _LANES), lambda c, j: (c, 0)),
                pl.BlockSpec((_SUBLANES, _LANES), lambda c, j: (c, 0)),
            ],
        ),
        compiler_params=pltpu.CompilerParams(
            # On v7x the first (size-2) axis shards the stream across both
            # TensorCores; elsewhere it has extent 1 and is a no-op.
            dimension_semantics=("parallel", "arbitrary"),
            vmem_limit_bytes=vmem_limit,
        ),
        cost_estimate=cost,
    )(o2d, t2d)

    sum_d = jnp.sum(part_d)
    sum_e = jnp.sum(part_e)
    if rem:
        # <128 trailing elements: trivially cheap fused reduction in the wrapper.
        t_tail = t_flat[n_main:].astype(jnp.float32)
        o_tail = o_flat[n_main:].astype(jnp.float32)
        d_tail = t_tail - o_tail
        sum_d = sum_d + jnp.sum(d_tail * d_tail)
        sum_e = sum_e + jnp.sum(t_tail * t_tail)

    n_f = jnp.float32(n)
    mean_loss = sum_d / n_f
    energy = sum_e / n_f + jnp.float32(_EPSILON)
    return mean_loss / energy


def _esr_loss_ref(output, target):
    diff = target.astype(jnp.float32) - output.astype(jnp.float32)
    loss = jnp.mean(diff * diff)
    energy = jnp.mean(target.astype(jnp.float32) ** 2) + _EPSILON
    return loss / energy


if __name__ == "__main__":
    key = jax.random.PRNGKey(0)
    k1, k2, k3, k4, k5, k6 = jax.random.split(key, 6)

    # CoreAudioML-style audio tensors: [seq_len, batch, channels].

    # Case 1: tiny, unaligned element count -> fused-XLA fast path.
    out1 = jax.random.normal(k1, (300, 2, 1), dtype=jnp.float32)
    tgt1 = jax.random.normal(k2, (300, 2, 1), dtype=jnp.float32)
    loss1 = esr_loss(out1, tgt1)
    jax.block_until_ready(loss1)
    ref1 = _esr_loss_ref(out1, tgt1)
    assert jnp.allclose(loss1, ref1, rtol=1e-4, atol=1e-6), (loss1, ref1)

    # Case 2: kernel path with n % 128 != 0 -> exercises the gated tail-tile
    # masking inside the kernel plus the wrapper-side remainder reduction.
    out2 = jax.random.normal(k3, (1000, 37, 1), dtype=jnp.float32)
    tgt2 = jax.random.normal(k4, (1000, 37, 1), dtype=jnp.float32)
    loss2 = esr_loss(out2, tgt2)
    jax.block_until_ready(loss2)
    ref2 = _esr_loss_ref(out2, tgt2)
    assert jnp.allclose(loss2, ref2, rtol=1e-4, atol=1e-6), (loss2, ref2)

    # Case 3: aligned multi-tile case -> exercises the unmasked streaming path
    # and cross-tile accumulation in the (8,128) resident output block.
    out3 = jax.random.normal(k5, (8192, 256, 1), dtype=jnp.float32)
    tgt3 = jax.random.normal(k6, (8192, 256, 1), dtype=jnp.float32)
    loss3 = esr_loss(out3, tgt3)
    jax.block_until_ready(loss3)
    ref3 = _esr_loss_ref(out3, tgt3)
    assert jnp.allclose(loss3, ref3, rtol=1e-4, atol=1e-6), (loss3, ref3)

    print("KERNEL_OK")
</pallas_src>

<mosaic_0001>
module attributes {stable_mosaic.version = 11 : i64} {
  func.func @_esr_kernel(%arg0: i32, %arg1: i32, %arg2: memref<296x128xf32, #tpu.memory_space<vmem>>, %arg3: memref<296x128xf32, #tpu.memory_space<vmem>>, %arg4: memref<8x128xf32, #tpu.memory_space<vmem>>, %arg5: memref<8x128xf32, #tpu.memory_space<vmem>>) attributes {dimension_semantics = [#tpu.dimension_semantics<parallel>, #tpu.dimension_semantics<arbitrary>], iteration_bounds = array<i64: 1, 1>, scalar_prefetch = 0 : i64, scratch_operands = 0 : i64, tpu.core_type = #tpu.core_type<tc>, window_params = [{transform_indices = @transform_0, window_bounds = array<i64: 296, 128>}, {transform_indices = @transform_1, window_bounds = array<i64: 296, 128>}, {transform_indices = @transform_2, window_bounds = array<i64: 8, 128>}, {transform_indices = @transform_3, window_bounds = array<i64: 8, 128>}]} {
    %c0_i32 = arith.constant 0 : i32
    %0 = arith.cmpi eq, %arg1, %c0_i32 : i32
    %1 = arith.extui %0 : i1 to i32
    %c0_i32_0 = arith.constant 0 : i32
    %2 = arith.cmpi ne, %1, %c0_i32_0 : i32
    scf.if %2 {
      %cst = arith.constant 0.000000e+00 : f32
      %15 = vector.broadcast %cst : f32 to vector<8x128xf32>
      %c0_8 = arith.constant 0 : index
      %c0_9 = arith.constant 0 : index
      %16 = vector.load %arg4[%c0_8, %c0_9] : memref<8x128xf32, #tpu.memory_space<vmem>>, vector<8x128xf32>
      tpu.vector_store %arg4[%c0_8, %c0_9], %15 {strides = array<i32>} : memref<8x128xf32, #tpu.memory_space<vmem>>, vector<8x128xf32>,
      %cst_10 = arith.constant 0.000000e+00 : f32
      %17 = vector.broadcast %cst_10 : f32 to vector<8x128xf32>
      %c0_11 = arith.constant 0 : index
      %c0_12 = arith.constant 0 : index
      %18 = vector.load %arg5[%c0_11, %c0_12] : memref<8x128xf32, #tpu.memory_space<vmem>>, vector<8x128xf32>
      tpu.vector_store %arg5[%c0_11, %c0_12], %17 {strides = array<i32>} : memref<8x128xf32, #tpu.memory_space<vmem>>, vector<8x128xf32>,
    } else {
    }
    %c0 = arith.constant 0 : index
    %c0_1 = arith.constant 0 : index
    %3 = vector.load %arg3[%c0, %c0_1] : memref<296x128xf32, #tpu.memory_space<vmem>>, vector<296x128xf32>
    %c0_2 = arith.constant 0 : index
    %c0_3 = arith.constant 0 : index
    %4 = vector.load %arg2[%c0_2, %c0_3] : memref<296x128xf32, #tpu.memory_space<vmem>>, vector<296x128xf32>
    %c1_i32 = arith.constant 1 : i32
    %5 = arith.muli %arg0, %c1_i32 : i32
    %6 = arith.addi %5, %arg1 : i32
    %c296_i32 = arith.constant 296 : i32
    %7 = arith.muli %6, %c296_i32 : i32
    %c289_i32 = arith.constant 289 : i32
    %8 = arith.subi %c289_i32, %7 : i32
    %c296_i32_4 = arith.constant 296 : i32
    %9 = arith.cmpi sge, %8, %c296_i32_4 : i32
    %10 = arith.extui %9 : i1 to i32
    %c0_i32_5 = arith.constant 0 : i32
    %11 = arith.cmpi ne, %10, %c0_i32_5 : i32
    scf.if %11 {
      %15 = arith.subf %3, %4 : vector<296x128xf32>
      %c0_8 = arith.constant 0 : index
      %c0_9 = arith.constant 0 : index
      %16 = vector.load %arg4[%c0_8, %c0_9] : memref<8x128xf32, #tpu.memory_space<vmem>>, vector<8x128xf32>
      %17 = arith.mulf %15, %15 : vector<296x128xf32>
      %18 = vector.shape_cast %17 : vector<296x128xf32> to vector<37x8x128xf32>
      %cst = arith.constant dense<0.000000e+00> : vector<8x128xf32>
      %19 = vector.multi_reduction <add>, %18, %cst [0] : vector<37x8x128xf32> to vector<8x128xf32>
      %20 = arith.addf %16, %19 : vector<8x128xf32>
      %c0_10 = arith.constant 0 : index
      %c0_11 = arith.constant 0 : index
      %21 = vector.load %arg4[%c0_10, %c0_11] : memref<8x128xf32, #tpu.memory_space<vmem>>, vector<8x128xf32>
      tpu.vector_store %arg4[%c0_10, %c0_11], %20 {strides = array<i32>} : memref<8x128xf32, #tpu.memory_space<vmem>>, vector<8x128xf32>,
      %c0_12 = arith.constant 0 : index
      %c0_13 = arith.constant 0 : index
      %22 = vector.load %arg5[%c0_12, %c0_13] : memref<8x128xf32, #tpu.memory_space<vmem>>, vector<8x128xf32>
      %23 = arith.mulf %3, %3 : vector<296x128xf32>
      %24 = vector.shape_cast %23 : vector<296x128xf32> to vector<37x8x128xf32>
      %cst_14 = arith.constant dense<0.000000e+00> : vector<8x128xf32>
      %25 = vector.multi_reduction <add>, %24, %cst_14 [0] : vector<37x8x128xf32> to vector<8x128xf32>
      %26 = arith.addf %22, %25 : vector<8x128xf32>
      %c0_15 = arith.constant 0 : index
      %c0_16 = arith.constant 0 : index
      %27 = vector.load %arg5[%c0_15, %c0_16] : memref<8x128xf32, #tpu.memory_space<vmem>>, vector<8x128xf32>
      tpu.vector_store %arg5[%c0_15, %c0_16], %26 {strides = array<i32>} : memref<8x128xf32, #tpu.memory_space<vmem>>, vector<8x128xf32>,
    } else {
    }
    %c296_i32_6 = arith.constant 296 : i32
    %12 = arith.cmpi slt, %8, %c296_i32_6 : i32
    %13 = arith.extui %12 : i1 to i32
    %c0_i32_7 = arith.constant 0 : i32
    %14 = arith.cmpi ne, %13, %c0_i32_7 : i32
    scf.if %14 {
      %15 = tpu.iota {dimensions = array<i32: 0>} : vector<296x128xi32>
      %16 = vector.broadcast %8 : i32 to vector<296x128xi32>
      %17 = arith.cmpi slt, %15, %16 : vector<296x128xi32>
      %cst = arith.constant 0.000000e+00 : f32
      %18 = vector.broadcast %cst : f32 to vector<296x128xf32>
      %19 = arith.select %17, %3, %18 : vector<296x128xi1>, vector<296x128xf32>
      %cst_8 = arith.constant 0.000000e+00 : f32
      %20 = vector.broadcast %cst_8 : f32 to vector<296x128xf32>
      %21 = arith.select %17, %4, %20 : vector<296x128xi1>, vector<296x128xf32>
      %22 = arith.subf %19, %21 : vector<296x128xf32>
      %c0_9 = arith.constant 0 : index
      %c0_10 = arith.constant 0 : index
      %23 = vector.load %arg4[%c0_9, %c0_10] : memref<8x128xf32, #tpu.memory_space<vmem>>, vector<8x128xf32>
      %24 = arith.mulf %22, %22 : vector<296x128xf32>
      %25 = vector.shape_cast %24 : vector<296x128xf32> to vector<37x8x128xf32>
      %cst_11 = arith.constant dense<0.000000e+00> : vector<8x128xf32>
      %26 = vector.multi_reduction <add>, %25, %cst_11 [0] : vector<37x8x128xf32> to vector<8x128xf32>
      %27 = arith.addf %23, %26 : vector<8x128xf32>
      %c0_12 = arith.constant 0 : index
      %c0_13 = arith.constant 0 : index
      %28 = vector.load %arg4[%c0_12, %c0_13] : memref<8x128xf32, #tpu.memory_space<vmem>>, vector<8x128xf32>
      tpu.vector_store %arg4[%c0_12, %c0_13], %27 {strides = array<i32>} : memref<8x128xf32, #tpu.memory_space<vmem>>, vector<8x128xf32>,
      %c0_14 = arith.constant 0 : index
      %c0_15 = arith.constant 0 : index
      %29 = vector.load %arg5[%c0_14, %c0_15] : memref<8x128xf32, #tpu.memory_space<vmem>>, vector<8x128xf32>
      %30 = arith.mulf %19, %19 : vector<296x128xf32>
      %31 = vector.shape_cast %30 : vector<296x128xf32> to vector<37x8x128xf32>
      %cst_16 = arith.constant dense<0.000000e+00> : vector<8x128xf32>
      %32 = vector.multi_reduction <add>, %31, %cst_16 [0] : vector<37x8x128xf32> to vector<8x128xf32>
      %33 = arith.addf %29, %32 : vector<8x128xf32>
      %c0_17 = arith.constant 0 : index
      %c0_18 = arith.constant 0 : index
      %34 = vector.load %arg5[%c0_17, %c0_18] : memref<8x128xf32, #tpu.memory_space<vmem>>, vector<8x128xf32>
      tpu.vector_store %arg5[%c0_17, %c0_18], %33 {strides = array<i32>} : memref<8x128xf32, #tpu.memory_space<vmem>>, vector<8x128xf32>,
    } else {
    }
    return
  }
  func.func @transform_0(%arg0: i32, %arg1: i32) -> (i32, i32) {
    %c1_i32 = arith.constant 1 : i32
    %0 = arith.muli %arg0, %c1_i32 : i32
    %1 = arith.addi %0, %arg1 : i32
    %c0_i32 = arith.constant 0 : i32
    %2 = arith.minsi %1, %c0_i32 : i32
    %c0_i32_0 = arith.constant 0 : i32
    %c0_i32_1 = arith.constant 0 : i32
    return %2, %c0_i32_0 : i32, i32
  }
  func.func @transform_1(%arg0: i32, %arg1: i32) -> (i32, i32) {
    %c1_i32 = arith.constant 1 : i32
    %0 = arith.muli %arg0, %c1_i32 : i32
    %1 = arith.addi %0, %arg1 : i32
    %c0_i32 = arith.constant 0 : i32
    %2 = arith.minsi %1, %c0_i32 : i32
    %c0_i32_0 = arith.constant 0 : i32
    %c0_i32_1 = arith.constant 0 : i32
    return %2, %c0_i32_0 : i32, i32
  }
  func.func @transform_2(%arg0: i32, %arg1: i32) -> (i32, i32) {
    %c0_i32 = arith.constant 0 : i32
    %c0_i32_0 = arith.constant 0 : i32
    return %arg0, %c0_i32 : i32, i32
  }
  func.func @transform_3(%arg0: i32, %arg1: i32) -> (i32, i32) {
    %c0_i32 = arith.constant 0 : i32
    %c0_i32_0 = arith.constant 0 : i32
    return %arg0, %c0_i32 : i32, i32
  }
}

</mosaic_0001>

<llo_original>
// kernel: tpu_custom_call.1
$region0: #{tpu_custom_call.1}
  #allocation0 [shape = 'u32[]', space=smem, size = 0x4, offset = 0x4, fixed_abs, tag = 'smem constant byte address 0x4 - core index']
  #allocation1 [shape = 'u32[144,128]{1,0:T(1,128)}', space=vmem, size = 0x12000, scoped, tag = 'internal scratch']
  %s0 = inlined_call_operand.hbm [shape: f32[289,128], index: 0, kind: input, shape index: {}]
  %s1 = inlined_call_operand.hbm [shape: f32[289,128], index: 1, kind: input, shape index: {}]
  %s2 = inlined_call_operand.hbm [shape: f32[8,128], index: 2, kind: output, shape index: {0}]
  %s3 = inlined_call_operand.hbm [shape: f32[8,128], index: 3, kind: output, shape index: {1}]
  %4 = xla_tuple %s2, %s3
  %s5 = sld [smem:[#allocation0]]
  $region46: #{tpu_custom_call.1} parent=0
    _
  %s7 = ssub.s32 1, %s5
  %s8 = scalar_select 0, %s7, %s5
  $region1: #{tpu_custom_call.1} parent=0
    #allocation2 [shape = 'u8[151552]{0}', space=vmem, size = 0x25000, scoped, tag = 'input window, operand 0, single buffered']
    #allocation3 [shape = 's32[1]{0}', space=sflag, size = 0x4, scoped, tag = 'scoped memory for tpu_custom_call.1']
    #allocation4 [shape = 's32[1]{0}', space=sflag, size = 0x4, scoped, tag = 'scoped memory for tpu_custom_call.1']
    #allocation5 [shape = 'u8[151552]{0}', space=vmem, size = 0x25000, scoped, tag = 'input window, operand 1, single buffered']
    #allocation6 [shape = 's32[1]{0}', space=sflag, size = 0x4, scoped, tag = 'scoped memory for tpu_custom_call.1']
    #allocation7 [shape = 'u8[4096]{0}', space=vmem, size = 0x1000, scoped, tag = 'output window, operand 0, single buffered']
    #allocation8 [shape = 'u8[4096]{0}', space=vmem, size = 0x1000, scoped, tag = 'output window, operand 1, single buffered']
    #allocation9 [shape = 's32[1]{0}', space=sflag, size = 0x4, scoped, tag = 'scoped memory for tpu_custom_call.1']
    %9 = vsyncpa [#allocation3], 0
    %10 = vsyncpa [#allocation6], 0
    %11 = vsyncpa [#allocation4], 0
    %12 = vsyncpa [#allocation9], 0
    // Predicated region
    $region2: #{tpu_custom_call.1} parent=1 // pred_check
      _
    $region3: #{tpu_custom_call.1} parent=1 // pred_check_branch
      %14 = sbr.rel (0) target = $region5
    $region4: #{tpu_custom_call.1} parent=1 // pred_region
      %s15 = sadd.s32 0, 0
      %p16 = scmp.lt.s32.totalorder %s15, 0
      %s17 = scalar_select %p16, %s15, 0
      %s18 = smul.u32 37, %s17
      %s20 = ssub.s32 4736, 4736
      %21 = vsyncadd [#allocation3], %s20
      %s22 = smul.addr %s18, 128
      %s23 = scalar_lea.hbm %s0, %s22
      %s24 = sshll.u32 [#allocation2], 4
      %s25 = int_to_ptr.vmem [resolvable:$true] %s24
      %30 = dma.hbm_to_vmem [thread:$0]  %s23, 4736, %s25, [#allocation3], 128, 128, 8
    $region5: #{tpu_custom_call.1} parent=1 // pred_fallthru
      _
    // Predicated region
    $region6: #{tpu_custom_call.1} parent=1 // pred_check
      _
    $region7: #{tpu_custom_call.1} parent=1 // pred_check_branch
      %32 = sbr.rel (0) target = $region9
    $region8: #{tpu_custom_call.1} parent=1 // pred_region
      %s33 = sadd.s32 0, 0
      %p34 = scmp.lt.s32.totalorder %s33, 0
      %s35 = scalar_select %p34, %s33, 0
      %s36 = smul.u32 37, %s35
      %s38 = ssub.s32 4736, 4736
      %39 = vsyncadd [#allocation6], %s38
      %s40 = smul.addr %s36, 128
      %s41 = scalar_lea.hbm %s1, %s40
      %s42 = sshll.u32 [#allocation5], 4
      %s43 = int_to_ptr.vmem [resolvable:$true] %s42
      %48 = dma.hbm_to_vmem [thread:$0]  %s41, 4736, %s43, [#allocation6], 128, 128, 8
    $region9: #{tpu_custom_call.1} parent=1 // pred_fallthru
      _
    // Predicated region
    $region10: #{tpu_custom_call.1} parent=1 // pred_check
      _
    $region11: #{tpu_custom_call.1} parent=1 // pred_check_branch
      %50 = sbr.rel (0) target = $region13
    $region12: #{tpu_custom_call.1} parent=1 // pred_region
      %51 = dma.done [#allocation3], 4736
    $region13: #{tpu_custom_call.1} parent=1 // pred_fallthru
      _
    // Predicated region
    $region14: #{tpu_custom_call.1} parent=1 // pred_check
      _
    $region15: #{tpu_custom_call.1} parent=1 // pred_check_branch
      %53 = sbr.rel (0) target = $region17
    $region16: #{tpu_custom_call.1} parent=1 // pred_region
      %54 = dma.done [#allocation6], 4736
    $region17: #{tpu_custom_call.1} parent=1 // pred_fallthru
      _
    %s55 = sadd.s32 0, 0
    %p56 = scmp.lt.s32.totalorder %s55, 0
    %s57 = scalar_select %p56, %s55, 0
    %s58 = smul.u32 37, %s57
    %s59 = sadd.s32 0, 0
    %p60 = scmp.lt.s32.totalorder %s59, 0
    %s61 = scalar_select %p60, %s59, 0
    %s62 = smul.u32 37, %s61
    %p63 = scmp.eq.s32.totalorder 0, 0
    // Predicated region
    $region18: #{tpu_custom_call.1} parent=1 // pred_check
      %p64 = pneg %p63
    $region19: #{tpu_custom_call.1} parent=1 // pred_check_branch
      %66 = sbr.rel (%p64) target = $region21
    $region20: #{tpu_custom_call.1} parent=1 // pred_region
      %67 = vst [vmem:[#allocation7] sm:$0xff] 0.0
      %68 = vst [vmem:[#allocation8] sm:$0xff] 0.0
    $region21: #{tpu_custom_call.1} parent=1 // pred_fallthru
      _
    %v69 = vld [vmem:[#allocation5] sm:$0xff]
    %v70 = vld [vmem:[#allocation5 + $0x8] sm:$0xff]
    %v71 = vld [vmem:[#allocation5 + $0x10] sm:$0xff]
    %v72 = vld [vmem:[#allocation5 + $0x18] sm:$0xff]
    %v73 = vld [vmem:[#allocation5 + $0x20] sm:$0xff]
    %v74 = vld [vmem:[#allocation5 + $0x28] sm:$0xff]
    %v75 = vld [vmem:[#allocation5 + $0x30] sm:$0xff]
    %v76 = vld [vmem:[#allocation5 + $0x38] sm:$0xff]
    %v77 = vld [vmem:[#allocation5 + $0x40] sm:$0xff]
    %v78 = vld [vmem:[#allocation5 + $0x48] sm:$0xff]
    %v79 = vld [vmem:[#allocation5 + $0x50] sm:$0xff]
    %v80 = vld [vmem:[#allocation5 + $0x58] sm:$0xff]
    %v81 = vld [vmem:[#allocation5 + $0x60] sm:$0xff]
    %v82 = vld [vmem:[#allocation5 + $0x68] sm:$0xff]
    %v83 = vld [vmem:[#allocation5 + $0x70] sm:$0xff]
    %v84 = vld [vmem:[#allocation5 + $0x78] sm:$0xff]
    %v85 = vld [vmem:[#allocation5 + $0x80] sm:$0xff]
    %v86 = vld [vmem:[#allocation5 + $0x88] sm:$0xff]
    %v87 = vld [vmem:[#allocation5 + $0x90] sm:$0xff]
    %v88 = vld [vmem:[#allocation5 + $0x98] sm:$0xff]
    %v89 = vld [vmem:[#allocation5 + $0xa0] sm:$0xff]
    %v90 = vld [vmem:[#allocation5 + $0xa8] sm:$0xff]
    %v91 = vld [vmem:[#allocation5 + $0xb0] sm:$0xff]
    %v92 = vld [vmem:[#allocation5 + $0xb8] sm:$0xff]
    %v93 = vld [vmem:[#allocation5 + $0xc0] sm:$0xff]
    %v94 = vld [vmem:[#allocation5 + $0xc8] sm:$0xff]
    %v95 = vld [vmem:[#allocation5 + $0xd0] sm:$0xff]
    %v96 = vld [vmem:[#allocation5 + $0xd8] sm:$0xff]
    %v97 = vld [vmem:[#allocation5 + $0xe0] sm:$0xff]
    %v98 = vld [vmem:[#allocation5 + $0xe8] sm:$0xff]
    %v99 = vld [vmem:[#allocation5 + $0xf0] sm:$0xff]
    %v100 = vld [vmem:[#allocation5 + $0xf8] sm:$0xff]
    %v101 = vld [vmem:[#allocation5 + $0x100] sm:$0xff]
    %v102 = vld [vmem:[#allocation5 + $0x108] sm:$0xff]
    %v103 = vld [vmem:[#allocation5 + $0x110] sm:$0xff]
    %v104 = vld [vmem:[#allocation5 + $0x118] sm:$0xff]
    %v105 = vld [vmem:[#allocation5 + $0x120] sm:$0xff]
    %v106 = vld [vmem:[#allocation2] sm:$0xff]
    %v107 = vld [vmem:[#allocation2 + $0x8] sm:$0xff]
    %v108 = vld [vmem:[#allocation2 + $0x10] sm:$0xff]
    %v109 = vld [vmem:[#allocation2 + $0x18] sm:$0xff]
    %v110 = vld [vmem:[#allocation2 + $0x20] sm:$0xff]
    %v111 = vld [vmem:[#allocation2 + $0x28] sm:$0xff]
    %v112 = vld [vmem:[#allocation2 + $0x30] sm:$0xff]
    %v113 = vld [vmem:[#allocation2 + $0x38] sm:$0xff]
    %v114 = vld [vmem:[#allocation2 + $0x40] sm:$0xff]
    %v115 = vld [vmem:[#allocation2 + $0x48] sm:$0xff]
    %v116 = vld [vmem:[#allocation2 + $0x50] sm:$0xff]
    %v117 = vld [vmem:[#allocation2 + $0x58] sm:$0xff]
    %v118 = vld [vmem:[#allocation2 + $0x60] sm:$0xff]
    %v119 = vld [vmem:[#allocation2 + $0x68] sm:$0xff]
    %v120 = vld [vmem:[#allocation2 + $0x70] sm:$0xff]
    %v121 = vld [vmem:[#allocation2 + $0x78] sm:$0xff]
    %v122 = vld [vmem:[#allocation2 + $0x80] sm:$0xff]
    %v123 = vld [vmem:[#allocation2 + $0x88] sm:$0xff]
    %v124 = vld [vmem:[#allocation2 + $0x90] sm:$0xff]
    %v125 = vld [vmem:[#allocation2 + $0x98] sm:$0xff]
    %v126 = vld [vmem:[#allocation2 + $0xa0] sm:$0xff]
    %v127 = vld [vmem:[#allocation2 + $0xa8] sm:$0xff]
    %v128 = vld [vmem:[#allocation2 + $0xb0] sm:$0xff]
    %v129 = vld [vmem:[#allocation2 + $0xb8] sm:$0xff]
    %v130 = vld [vmem:[#allocation2 + $0xc0] sm:$0xff]
    %v131 = vld [vmem:[#allocation2 + $0xc8] sm:$0xff]
    %v132 = vld [vmem:[#allocation2 + $0xd0] sm:$0xff]
    %v133 = vld [vmem:[#allocation2 + $0xd8] sm:$0xff]
    %v134 = vld [vmem:[#allocation2 + $0xe0] sm:$0xff]
    %v135 = vld [vmem:[#allocation2 + $0xe8] sm:$0xff]
    %v136 = vld [vmem:[#allocation2 + $0xf0] sm:$0xff]
    %v137 = vld [vmem:[#allocation2 + $0xf8] sm:$0xff]
    %v138 = vld [vmem:[#allocation2 + $0x100] sm:$0xff]
    %v139 = vld [vmem:[#allocation2 + $0x108] sm:$0xff]
    %v140 = vld [vmem:[#allocation2 + $0x110] sm:$0xff]
    %v141 = vld [vmem:[#allocation2 + $0x118] sm:$0xff]
    %v142 = vld [vmem:[#allocation2 + $0x120] sm:$0xff]
    %s143 = sadd.s32 0, 0
    %s144 = smul.u32 %s143, 296
    %s145 = ssub.s32 289, %s144
    %p146 = scmp.ge.s32.totalorder %s145, 296
    // Predicated region
    $region22: #{tpu_custom_call.1} parent=1 // pred_check
      %p147 = pneg %p146
    $region23: #{tpu_custom_call.1} parent=1 // pred_check_branch
      %149 = sbr.rel (%p147) target = $region25
    $region24: #{tpu_custom_call.1} parent=1 // pred_region
      %v150 = vsub.f32 %v69, %v106
      %v151 = vsub.f32 %v70, %v107
      %v152 = vsub.f32 %v71, %v108
      %v153 = vsub.f32 %v72, %v109
      %v154 = vsub.f32 %v73, %v110
      %v155 = vsub.f32 %v74, %v111
      %v156 = vsub.f32 %v75, %v112
      %v157 = vsub.f32 %v76, %v113
      %v158 = vsub.f32 %v77, %v114
      %v159 = vsub.f32 %v78, %v115
      %v160 = vsub.f32 %v79, %v116
      %v161 = vsub.f32 %v80, %v117
      %v162 = vsub.f32 %v81, %v118
      %v163 = vsub.f32 %v82, %v119
      %v164 = vsub.f32 %v83, %v120
      %v165 = vsub.f32 %v84, %v121
      %v166 = vsub.f32 %v85, %v122
      %v167 = vsub.f32 %v86, %v123
      %v168 = vsub.f32 %v87, %v124
      %v169 = vsub.f32 %v88, %v125
      %v170 = vsub.f32 %v89, %v126
      %v171 = vsub.f32 %v90, %v127
      %v172 = vsub.f32 %v91, %v128
      %v173 = vsub.f32 %v92, %v129
      %v174 = vsub.f32 %v93, %v130
      %v175 = vsub.f32 %v94, %v131
      %v176 = vsub.f32 %v95, %v132
      %v177 = vsub.f32 %v96, %v133
      %v178 = vsub.f32 %v97, %v134
      %v179 = vsub.f32 %v98, %v135
      %v180 = vsub.f32 %v99, %v136
      %v181 = vsub.f32 %v100, %v137
      %v182 = vsub.f32 %v101, %v138
      %v183 = vsub.f32 %v102, %v139
      %v184 = vsub.f32 %v103, %v140
      %v185 = vsub.f32 %v104, %v141
      %v186 = vsub.f32 %v105, %v142
      %v187 = vld [vmem:[#allocation7] sm:$0xff]
      %v188 = vmul.f32 %v150, %v150
      %v189 = vmul.f32 %v151, %v151
      %v190 = vmul.f32 %v152, %v152
      %v191 = vmul.f32 %v153, %v153
      %v192 = vmul.f32 %v154, %v154
      %v193 = vmul.f32 %v155, %v155
      %v194 = vmul.f32 %v156, %v156
      %v195 = vmul.f32 %v157, %v157
      %v196 = vmul.f32 %v158, %v158
      %v197 = vmul.f32 %v159, %v159
      %v198 = vmul.f32 %v160, %v160
      %v199 = vmul.f32 %v161, %v161
      %v200 = vmul.f32 %v162, %v162
      %v201 = vmul.f32 %v163, %v163
      %v202 = vmul.f32 %v164, %v164
      %v203 = vmul.f32 %v165, %v165
      %v204 = vmul.f32 %v166, %v166
      %v205 = vmul.f32 %v167, %v167
      %v206 = vmul.f32 %v168, %v168
      %v207 = vmul.f32 %v169, %v169
      %v208 = vmul.f32 %v170, %v170
      %v209 = vmul.f32 %v171, %v171
      %v210 = vmul.f32 %v172, %v172
      %v211 = vmul.f32 %v173, %v173
      %v212 = vmul.f32 %v174, %v174
      %v213 = vmul.f32 %v175, %v175
      %v214 = vmul.f32 %v176, %v176
      %v215 = vmul.f32 %v177, %v177
      %v216 = vmul.f32 %v178, %v178
      %v217 = vmul.f32 %v179, %v179
      %v218 = vmul.f32 %v180, %v180
      %v219 = vmul.f32 %v181, %v181
      %v220 = vmul.f32 %v182, %v182
      %v221 = vmul.f32 %v183, %v183
      %v222 = vmul.f32 %v184, %v184
      %v223 = vmul.f32 %v185, %v185
      %v224 = vmul.f32 %v186, %v186
      %v225 = vadd.f32 %v188, %v189
      %v226 = vadd.f32 %v225, %v190
      %v227 = vadd.f32 %v226, %v191
      %v228 = vadd.f32 %v227, %v192
      %v229 = vadd.f32 %v228, %v193
      %v230 = vadd.f32 %v229, %v194
      %v231 = vadd.f32 %v230, %v195
      %v232 = vadd.f32 %v231, %v196
      %v233 = vadd.f32 %v232, %v197
      %v234 = vadd.f32 %v233, %v198
      %v235 = vadd.f32 %v234, %v199
      %v236 = vadd.f32 %v235, %v200
      %v237 = vadd.f32 %v236, %v201
      %v238 = vadd.f32 %v237, %v202
      %v239 = vadd.f32 %v238, %v203
      %v240 = vadd.f32 %v239, %v204
      %v241 = vadd.f32 %v240, %v205
      %v242 = vadd.f32 %v241, %v206
      %v243 = vadd.f32 %v242, %v207
      %v244 = vadd.f32 %v243, %v208
      %v245 = vadd.f32 %v244, %v209
      %v246 = vadd.f32 %v245, %v210
      %v247 = vadd.f32 %v246, %v211
      %v248 = vadd.f32 %v247, %v212
      %v249 = vadd.f32 %v248, %v213
      %v250 = vadd.f32 %v249, %v214
      %v251 = vadd.f32 %v250, %v215
      %v252 = vadd.f32 %v251, %v216
      %v253 = vadd.f32 %v252, %v217
      %v254 = vadd.f32 %v253, %v218
      %v255 = vadd.f32 %v254, %v219
      %v256 = vadd.f32 %v255, %v220
      %v257 = vadd.f32 %v256, %v221
      %v258 = vadd.f32 %v257, %v222
      %v259 = vadd.f32 %v258, %v223
      %v260 = vadd.f32 %v259, %v224
      %v261 = vadd.f32 %v187, %v260
      %262 = vst [vmem:[#allocation7] sm:$0xff] %v261
      %v263 = vld [vmem:[#allocation8] sm:$0xff]
      %v264 = vmul.f32 %v69, %v69
      %v265 = vmul.f32 %v70, %v70
      %v266 = vmul.f32 %v71, %v71
      %v267 = vmul.f32 %v72, %v72
      %v268 = vmul.f32 %v73, %v73
      %v269 = vmul.f32 %v74, %v74
      %v270 = vmul.f32 %v75, %v75
      %v271 = vmul.f32 %v76, %v76
      %v272 = vmul.f32 %v77, %v77
      %v273 = vmul.f32 %v78, %v78
      %v274 = vmul.f32 %v79, %v79
      %v275 = vmul.f32 %v80, %v80
      %v276 = vmul.f32 %v81, %v81
      %v277 = vmul.f32 %v82, %v82
      %v278 = vmul.f32 %v83, %v83
      %v279 = vmul.f32 %v84, %v84
      %v280 = vmul.f32 %v85, %v85
      %v281 = vmul.f32 %v86, %v86
      %v282 = vmul.f32 %v87, %v87
      %v283 = vmul.f32 %v88, %v88
      %v284 = vmul.f32 %v89, %v89
      %v285 = vmul.f32 %v90, %v90
      %v286 = vmul.f32 %v91, %v91
      %v287 = vmul.f32 %v92, %v92
      %v288 = vmul.f32 %v93, %v93
      %v289 = vmul.f32 %v94, %v94
      %v290 = vmul.f32 %v95, %v95
      %v291 = vmul.f32 %v96, %v96
      %v292 = vmul.f32 %v97, %v97
      %v293 = vmul.f32 %v98, %v98
      %v294 = vmul.f32 %v99, %v99
      %v295 = vmul.f32 %v100, %v100
      %v296 = vmul.f32 %v101, %v101
      %v297 = vmul.f32 %v102, %v102
      %v298 = vmul.f32 %v103, %v103
      %v299 = vmul.f32 %v104, %v104
      %v300 = vmul.f32 %v105, %v105
      %v301 = vadd.f32 %v264, %v265
      %v302 = vadd.f32 %v301, %v266
      %v303 = vadd.f32 %v302, %v267
      %v304 = vadd.f32 %v303, %v268
      %v305 = vadd.f32 %v304, %v269
      %v306 = vadd.f32 %v305, %v270
      %v307 = vadd.f32 %v306, %v271
      %v308 = vadd.f32 %v307, %v272
      %v309 = vadd.f32 %v308, %v273
      %v310 = vadd.f32 %v309, %v274
      %v311 = vadd.f32 %v310, %v275
      %v312 = vadd.f32 %v311, %v276
      %v313 = vadd.f32 %v312, %v277
      %v314 = vadd.f32 %v313, %v278
      %v315 = vadd.f32 %v314, %v279
      %v316 = vadd.f32 %v315, %v280
      %v317 = vadd.f32 %v316, %v281
      %v318 = vadd.f32 %v317, %v282
      %v319 = vadd.f32 %v318, %v283
      %v320 = vadd.f32 %v319, %v284
      %v321 = vadd.f32 %v320, %v285
      %v322 = vadd.f32 %v321, %v286
      %v323 = vadd.f32 %v322, %v287
      %v324 = vadd.f32 %v323, %v288
      %v325 = vadd.f32 %v324, %v289
      %v326 = vadd.f32 %v325, %v290
      %v327 = vadd.f32 %v326, %v291
      %v328 = vadd.f32 %v327, %v292
      %v329 = vadd.f32 %v328, %v293
      %v330 = vadd.f32 %v329, %v294
      %v331 = vadd.f32 %v330, %v295
      %v332 = vadd.f32 %v331, %v296
      %v333 = vadd.f32 %v332, %v297
      %v334 = vadd.f32 %v333, %v298
      %v335 = vadd.f32 %v334, %v299
      %v336 = vadd.f32 %v335, %v300
      %v337 = vadd.f32 %v263, %v336
      %338 = vst [vmem:[#allocation8] sm:$0xff] %v337
    $region25: #{tpu_custom_call.1} parent=1 // pred_fallthru
      _
    %p339 = scmp.lt.s32.totalorder %s145, 296
    // Predicated region
    $region26: #{tpu_custom_call.1} parent=1 // pred_check
      %p340 = pneg %p339
    $region27: #{tpu_custom_call.1} parent=1 // pred_check_branch
      %342 = sbr.rel (%p340) target = $region29
    $region28: #{tpu_custom_call.1} parent=1 // pred_region
      %v343 = vlaneseq
      %v344 = vshrl.u32 %v343, 7
      %v345 = vadd.s32 %v344, 8
      %v346 = vadd.s32 %v344, 16
      %v347 = vadd.s32 %v344, 24
      %v348 = vadd.s32 %v344, 32
      %v349 = vadd.s32 %v344, 40
      %v350 = vadd.s32 %v344, 48
      %v351 = vadd.s32 %v344, 56
      %v352 = vadd.s32 %v344, 64
      %v353 = vadd.s32 %v344, 72
      %v354 = vadd.s32 %v344, 80
      %v355 = vadd.s32 %v344, 88
      %v356 = vadd.s32 %v344, 96
      %v357 = vadd.s32 %v344, 104
      %v358 = vadd.s32 %v344, 112
      %v359 = vadd.s32 %v344, 120
      %v360 = vadd.s32 %v344, 128
      %v361 = vadd.s32 %v344, 136
      %v362 = vadd.s32 %v344, 144
      %v363 = vadd.s32 %v344, 152
      %v364 = vadd.s32 %v344, 160
      %v365 = vadd.s32 %v344, 168
      %v366 = vadd.s32 %v344, 176
      %v367 = vadd.s32 %v344, 184
      %v368 = vadd.s32 %v344, 192
      %v369 = vadd.s32 %v344, 200
      %v370 = vadd.s32 %v344, 208
      %v371 = vadd.s32 %v344, 216
      %v372 = vadd.s32 %v344, 224
      %v373 = vadd.s32 %v344, 232
      %v374 = vadd.s32 %v344, 240
      %v375 = vadd.s32 %v344, 248
      %v376 = vadd.s32 %v344, 256
      %v377 = vadd.s32 %v344, 264
      %v378 = vadd.s32 %v344, 272
      %v379 = vadd.s32 %v344, 280
      %v380 = vadd.s32 %v344, 288
      %v381 = vstv %s145
      %vm382 = vcmp.lt.s32.totalorder %v344, %v381
      %vm383 = vcmp.lt.s32.totalorder %v345, %v381
      %vm384 = vcmp.lt.s32.totalorder %v346, %v381
      %vm385 = vcmp.lt.s32.totalorder %v347, %v381
      %vm386 = vcmp.lt.s32.totalorder %v348, %v381
      %vm387 = vcmp.lt.s32.totalorder %v349, %v381
      %vm388 = vcmp.lt.s32.totalorder %v350, %v381
      %vm389 = vcmp.lt.s32.totalorder %v351, %v381
      %vm390 = vcmp.lt.s32.totalorder %v352, %v381
      %vm391 = vcmp.lt.s32.totalorder %v353, %v381
      %vm392 = vcmp.lt.s32.totalorder %v354, %v381
      %vm393 = vcmp.lt.s32.totalorder %v355, %v381
      %vm394 = vcmp.lt.s32.totalorder %v356, %v381
      %vm395 = vcmp.lt.s32.totalorder %v357, %v381
      %vm396 = vcmp.lt.s32.totalorder %v358, %v381
      %vm397 = vcmp.lt.s32.totalorder %v359, %v381
      %vm398 = vcmp.lt.s32.totalorder %v360, %v381
      %vm399 = vcmp.lt.s32.totalorder %v361, %v381
      %vm400 = vcmp.lt.s32.totalorder %v362, %v381
      %vm401 = vcmp.lt.s32.totalorder %v363, %v381
      %vm402 = vcmp.lt.s32.totalorder %v364, %v381
      %vm403 = vcmp.lt.s32.totalorder %v365, %v381
      %vm404 = vcmp.lt.s32.totalorder %v366, %v381
      %vm405 = vcmp.lt.s32.totalorder %v367, %v381
      %vm406 = vcmp.lt.s32.totalorder %v368, %v381
      %vm407 = vcmp.lt.s32.totalorder %v369, %v381
      %vm408 = vcmp.lt.s32.totalorder %v370, %v381
      %vm409 = vcmp.lt.s32.totalorder %v371, %v381
      %vm410 = vcmp.lt.s32.totalorder %v372, %v381
      %vm411 = vcmp.lt.s32.totalorder %v373, %v381
      %vm412 = vcmp.lt.s32.totalorder %v374, %v381
      %vm413 = vcmp.lt.s32.totalorder %v375, %v381
      %vm414 = vcmp.lt.s32.totalorder %v376, %v381
      %vm415 = vcmp.lt.s32.totalorder %v377, %v381
      %vm416 = vcmp.lt.s32.totalorder %v378, %v381
      %vm417 = vcmp.lt.s32.totalorder %v379, %v381
      %vm418 = vcmp.lt.s32.totalorder %v380, %v381
      %v419 = vsel %vm382, %v69, 0.0
      %v420 = vsel %vm383, %v70, 0.0
      %v421 = vsel %vm384, %v71, 0.0
      %v422 = vsel %vm385, %v72, 0.0
      %v423 = vsel %vm386, %v73, 0.0
      %v424 = vsel %vm387, %v74, 0.0
      %v425 = vsel %vm388, %v75, 0.0
      %v426 = vsel %vm389, %v76, 0.0
      %v427 = vsel %vm390, %v77, 0.0
      %v428 = vsel %vm391, %v78, 0.0
      %v429 = vsel %vm392, %v79, 0.0
      %v430 = vsel %vm393, %v80, 0.0
      %v431 = vsel %vm394, %v81, 0.0
      %v432 = vsel %vm395, %v82, 0.0
      %v433 = vsel %vm396, %v83, 0.0
      %v434 = vsel %vm397, %v84, 0.0
      %v435 = vsel %vm398, %v85, 0.0
      %v436 = vsel %vm399, %v86, 0.0
      %v437 = vsel %vm400, %v87, 0.0
      %v438 = vsel %vm401, %v88, 0.0
      %v439 = vsel %vm402, %v89, 0.0
      %v440 = vsel %vm403, %v90, 0.0
      %v441 = vsel %vm404, %v91, 0.0
      %v442 = vsel %vm405, %v92, 0.0
      %v443 = vsel %vm406, %v93, 0.0
      %v444 = vsel %vm407, %v94, 0.0
      %v445 = vsel %vm408, %v95, 0.0
      %v446 = vsel %vm409, %v96, 0.0
      %v447 = vsel %vm410, %v97, 0.0
      %v448 = vsel %vm411, %v98, 0.0
      %v449 = vsel %vm412, %v99, 0.0
      %v450 = vsel %vm413, %v100, 0.0
      %v451 = vsel %vm414, %v101, 0.0
      %v452 = vsel %vm415, %v102, 0.0
      %v453 = vsel %vm416, %v103, 0.0
      %v454 = vsel %vm417, %v104, 0.0
      %v455 = vsel %vm418, %v105, 0.0
      %v456 = vsel %vm382, %v106, 0.0
      %v457 = vsel %vm383, %v107, 0.0
      %v458 = vsel %vm384, %v108, 0.0
      %v459 = vsel %vm385, %v109, 0.0
      %v460 = vsel %vm386, %v110, 0.0
      %v461 = vsel %vm387, %v111, 0.0
      %v462 = vsel %vm388, %v112, 0.0
      %v463 = vsel %vm389, %v113, 0.0
      %v464 = vsel %vm390, %v114, 0.0
      %v465 = vsel %vm391, %v115, 0.0
      %v466 = vsel %vm392, %v116, 0.0
      %v467 = vsel %vm393, %v117, 0.0
      %v468 = vsel %vm394, %v118, 0.0
      %v469 = vsel %vm395, %v119, 0.0
      %v470 = vsel %vm396, %v120, 0.0
      %v471 = vsel %vm397, %v121, 0.0
      %v472 = vsel %vm398, %v122, 0.0
      %v473 = vsel %vm399, %v123, 0.0
      %v474 = vsel %vm400, %v124, 0.0
      %v475 = vsel %vm401, %v125, 0.0
      %v476 = vsel %vm402, %v126, 0.0
      %v477 = vsel %vm403, %v127, 0.0
      %v478 = vsel %vm404, %v128, 0.0
      %v479 = vsel %vm405, %v129, 0.0
      %v480 = vsel %vm406, %v130, 0.0
      %v481 = vsel %vm407, %v131, 0.0
      %v482 = vsel %vm408, %v132, 0.0
      %v483 = vsel %vm409, %v133, 0.0
      %v484 = vsel %vm410, %v134, 0.0
      %v485 = vsel %vm411, %v135, 0.0
      %v486 = vsel %vm412, %v136, 0.0
      %v487 = vsel %vm413, %v137, 0.0
      %v488 = vsel %vm414, %v138, 0.0
      %v489 = vsel %vm415, %v139, 0.0
      %v490 = vsel %vm416, %v140, 0.0
      %v491 = vsel %vm417, %v141, 0.0
      %v492 = vsel %vm418, %v142, 0.0
      %v493 = vsub.f32 %v419, %v456
      %v494 = vsub.f32 %v420, %v457
      %v495 = vsub.f32 %v421, %v458
      %v496 = vsub.f32 %v422, %v459
      %v497 = vsub.f32 %v423, %v460
      %v498 = vsub.f32 %v424, %v461
      %v499 = vsub.f32 %v425, %v462
      %v500 = vsub.f32 %v426, %v463
      %v501 = vsub.f32 %v427, %v464
      %v502 = vsub.f32 %v428, %v465
      %v503 = vsub.f32 %v429, %v466
      %v504 = vsub.f32 %v430, %v467
      %v505 = vsub.f32 %v431, %v468
      %v506 = vsub.f32 %v432, %v469
      %v507 = vsub.f32 %v433, %v470
      %v508 = vsub.f32 %v434, %v471
      %v509 = vsub.f32 %v435, %v472
      %v510 = vsub.f32 %v436, %v473
      %v511 = vsub.f32 %v437, %v474
      %v512 = vsub.f32 %v438, %v475
      %v513 = vsub.f32 %v439, %v476
      %v514 = vsub.f32 %v440, %v477
      %v515 = vsub.f32 %v441, %v478
      %v516 = vsub.f32 %v442, %v479
      %v517 = vsub.f32 %v443, %v480
      %v518 = vsub.f32 %v444, %v481
      %v519 = vsub.f32 %v445, %v482
      %v520 = vsub.f32 %v446, %v483
      %v521 = vsub.f32 %v447, %v484
      %v522 = vsub.f32 %v448, %v485
      %v523 = vsub.f32 %v449, %v486
      %v524 = vsub.f32 %v450, %v487
      %v525 = vsub.f32 %v451, %v488
      %v526 = vsub.f32 %v452, %v489
      %v527 = vsub.f32 %v453, %v490
      %v528 = vsub.f32 %v454, %v491
      %v529 = vsub.f32 %v455, %v492
      %v530 = vld [vmem:[#allocation7] sm:$0xff]
      %v531 = vmul.f32 %v493, %v493
      %v532 = vmul.f32 %v494, %v494
      %v533 = vmul.f32 %v495, %v495
      %v534 = vmul.f32 %v496, %v496
      %v535 = vmul.f32 %v497, %v497
      %v536 = vmul.f32 %v498, %v498
      %v537 = vmul.f32 %v499, %v499
      %v538 = vmul.f32 %v500, %v500
      %v539 = vmul.f32 %v501, %v501
      %v540 = vmul.f32 %v502, %v502
      %v541 = vmul.f32 %v503, %v503
      %v542 = vmul.f32 %v504, %v504
      %v543 = vmul.f32 %v505, %v505
      %v544 = vmul.f32 %v506, %v506
      %v545 = vmul.f32 %v507, %v507
      %v546 = vmul.f32 %v508, %v508
      %v547 = vmul.f32 %v509, %v509
      %v548 = vmul.f32 %v510, %v510
      %v549 = vmul.f32 %v511, %v511
      %v550 = vmul.f32 %v512, %v512
      %v551 = vmul.f32 %v513, %v513
      %v552 = vmul.f32 %v514, %v514
      %v553 = vmul.f32 %v515, %v515
      %v554 = vmul.f32 %v516, %v516
      %v555 = vmul.f32 %v517, %v517
      %v556 = vmul.f32 %v518, %v518
      %v557 = vmul.f32 %v519, %v519
      %v558 = vmul.f32 %v520, %v520
      %v559 = vmul.f32 %v521, %v521
      %v560 = vmul.f32 %v522, %v522
      %v561 = vmul.f32 %v523, %v523
      %v562 = vmul.f32 %v524, %v524
      %v563 = vmul.f32 %v525, %v525
      %v564 = vmul.f32 %v526, %v526
      %v565 = vmul.f32 %v527, %v527
      %v566 = vmul.f32 %v528, %v528
      %v567 = vmul.f32 %v529, %v529
      %v568 = vadd.f32 %v531, %v532
      %v569 = vadd.f32 %v568, %v533
      %v570 = vadd.f32 %v569, %v534
      %v571 = vadd.f32 %v570, %v535
      %v572 = vadd.f32 %v571, %v536
      %v573 = vadd.f32 %v572, %v537
      %v574 = vadd.f32 %v573, %v538
      %v575 = vadd.f32 %v574, %v539
      %v576 = vadd.f32 %v575, %v540
      %v577 = vadd.f32 %v576, %v541
      %v578 = vadd.f32 %v577, %v542
      %v579 = vadd.f32 %v578, %v543
      %v580 = vadd.f32 %v579, %v544
      %v581 = vadd.f32 %v580, %v545
      %v582 = vadd.f32 %v581, %v546
      %v583 = vadd.f32 %v582, %v547
      %v584 = vadd.f32 %v583, %v548
      %v585 = vadd.f32 %v584, %v549
      %v586 = vadd.f32 %v585, %v550
      %v587 = vadd.f32 %v586, %v551
      %v588 = vadd.f32 %v587, %v552
      %v589 = vadd.f32 %v588, %v553
      %v590 = vadd.f32 %v589, %v554
      %v591 = vadd.f32 %v590, %v555
      %v592 = vadd.f32 %v591, %v556
      %v593 = vadd.f32 %v592, %v557
      %v594 = vadd.f32 %v593, %v558
      %v595 = vadd.f32 %v594, %v559
      %v596 = vadd.f32 %v595, %v560
      %v597 = vadd.f32 %v596, %v561
      %v598 = vadd.f32 %v597, %v562
      %v599 = vadd.f32 %v598, %v563
      %v600 = vadd.f32 %v599, %v564
      %v601 = vadd.f32 %v600, %v565
      %v602 = vadd.f32 %v601, %v566
      %v603 = vadd.f32 %v602, %v567
      %v604 = vadd.f32 %v530, %v603
      %605 = vst [vmem:[#allocation7] sm:$0xff] %v604
      %v606 = vld [vmem:[#allocation8] sm:$0xff]
      %v607 = vmul.f32 %v419, %v419
      %v608 = vmul.f32 %v420, %v420
      %v609 = vmul.f32 %v421, %v421
      %v610 = vmul.f32 %v422, %v422
      %v611 = vmul.f32 %v423, %v423
      %v612 = vmul.f32 %v424, %v424
      %v613 = vmul.f32 %v425, %v425
      %v614 = vmul.f32 %v426, %v426
      %v615 = vmul.f32 %v427, %v427
      %v616 = vmul.f32 %v428, %v428
      %v617 = vmul.f32 %v429, %v429
      %v618 = vmul.f32 %v430, %v430
      %v619 = vmul.f32 %v431, %v431
      %v620 = vmul.f32 %v432, %v432
      %v621 = vmul.f32 %v433, %v433
      %v622 = vmul.f32 %v434, %v434
      %v623 = vmul.f32 %v435, %v435
      %v624 = vmul.f32 %v436, %v436
      %v625 = vmul.f32 %v437, %v437
      %v626 = vmul.f32 %v438, %v438
      %v627 = vmul.f32 %v439, %v439
      %v628 = vmul.f32 %v440, %v440
      %v629 = vmul.f32 %v441, %v441
      %v630 = vmul.f32 %v442, %v442
      %v631 = vmul.f32 %v443, %v443
      %v632 = vmul.f32 %v444, %v444
      %v633 = vmul.f32 %v445, %v445
      %v634 = vmul.f32 %v446, %v446
      %v635 = vmul.f32 %v447, %v447
      %v636 = vmul.f32 %v448, %v448
      %v637 = vmul.f32 %v449, %v449
      %v638 = vmul.f32 %v450, %v450
      %v639 = vmul.f32 %v451, %v451
      %v640 = vmul.f32 %v452, %v452
      %v641 = vmul.f32 %v453, %v453
      %v642 = vmul.f32 %v454, %v454
      %v643 = vmul.f32 %v455, %v455
      %v644 = vadd.f32 %v607, %v608
      %v645 = vadd.f32 %v644, %v609
      %v646 = vadd.f32 %v645, %v610
      %v647 = vadd.f32 %v646, %v611
      %v648 = vadd.f32 %v647, %v612
      %v649 = vadd.f32 %v648, %v613
      %v650 = vadd.f32 %v649, %v614
      %v651 = vadd.f32 %v650, %v615
      %v652 = vadd.f32 %v651, %v616
      %v653 = vadd.f32 %v652, %v617
      %v654 = vadd.f32 %v653, %v618
      %v655 = vadd.f32 %v654, %v619
      %v656 = vadd.f32 %v655, %v620
      %v657 = vadd.f32 %v656, %v621
      %v658 = vadd.f32 %v657, %v622
      %v659 = vadd.f32 %v658, %v623
      %v660 = vadd.f32 %v659, %v624
      %v661 = vadd.f32 %v660, %v625
      %v662 = vadd.f32 %v661, %v626
      %v663 = vadd.f32 %v662, %v627
      %v664 = vadd.f32 %v663, %v628
      %v665 = vadd.f32 %v664, %v629
      %v666 = vadd.f32 %v665, %v630
      %v667 = vadd.f32 %v666, %v631
      %v668 = vadd.f32 %v667, %v632
      %v669 = vadd.f32 %v668, %v633
      %v670 = vadd.f32 %v669, %v634
      %v671 = vadd.f32 %v670, %v635
      %v672 = vadd.f32 %v671, %v636
      %v673 = vadd.f32 %v672, %v637
      %v674 = vadd.f32 %v673, %v638
      %v675 = vadd.f32 %v674, %v639
      %v676 = vadd.f32 %v675, %v640
      %v677 = vadd.f32 %v676, %v641
      %v678 = vadd.f32 %v677, %v642
      %v679 = vadd.f32 %v678, %v643
      %v680 = vadd.f32 %v606, %v679
      %681 = vst [vmem:[#allocation8] sm:$0xff] %v680
    $region29: #{tpu_custom_call.1} parent=1 // pred_fallthru
      _
    // Predicated region
    $region30: #{tpu_custom_call.1} parent=1 // pred_check
      _
    $region31: #{tpu_custom_call.1} parent=1 // pred_check_branch
      %683 = sbr.rel (0) target = $region33
    $region32: #{tpu_custom_call.1} parent=1 // pred_region
      %s685 = ssub.s32 128, 128
      %686 = vsyncadd [#allocation4], %s685
      %s688 = sshll.u32 [#allocation7], 4
      %s689 = int_to_ptr.vmem [resolvable:$true] %s688
      %691 = dma.vmem_to_hbm [thread:$0]  %s689, 128, %s2, [#allocation4]
    $region33: #{tpu_custom_call.1} parent=1 // pred_fallthru
      _
    // Predicated region
    $region34: #{tpu_custom_call.1} parent=1 // pred_check
      _
    $region35: #{tpu_custom_call.1} parent=1 // pred_check_branch
      %693 = sbr.rel (0) target = $region37
    $region36: #{tpu_custom_call.1} parent=1 // pred_region
      %s695 = ssub.s32 128, 128
      %696 = vsyncadd [#allocation9], %s695
      %s698 = sshll.u32 [#allocation8], 4
      %s699 = int_to_ptr.vmem [resolvable:$true] %s698
      %701 = dma.vmem_to_hbm [thread:$0]  %s699, 128, %s3, [#allocation9]
    $region37: #{tpu_custom_call.1} parent=1 // pred_fallthru
      _
    // Predicated region
    $region38: #{tpu_custom_call.1} parent=1 // pred_check
      _
    $region39: #{tpu_custom_call.1} parent=1 // pred_check_branch
      %703 = sbr.rel (0) target = $region41
    $region40: #{tpu_custom_call.1} parent=1 // pred_region
      %704 = dma.done [#allocation4], 128
    $region41: #{tpu_custom_call.1} parent=1 // pred_fallthru
      _
    // Predicated region
    $region42: #{tpu_custom_call.1} parent=1 // pred_check
      _
    $region43: #{tpu_custom_call.1} parent=1 // pred_check_branch
      %706 = sbr.rel (0) target = $region45
    $region44: #{tpu_custom_call.1} parent=1 // pred_region
      %707 = dma.done [#allocation9], 128
    $region45: #{tpu_custom_call.1} parent=1 // pred_fallthru
      _
    %708 = vsyncpa [#allocation3], 1
    %709 = vsyncpa [#allocation6], 1
    %710 = vsyncpa [#allocation4], 1
    %711 = vsyncpa [#allocation9], 1

</llo_original>
